<compile_context>
chip_gen: v6e
topology: v6e:2x2x1
jax: 0.10.0
libtpu: 0.0.40
codegen_flags: <defaults>
</compile_context>

<pallas_src>
import functools

import jax
import jax.numpy as jnp
from jax.experimental import pallas as pl
from jax.experimental.pallas import tpu as pltpu


def _round_up(x, m):
    return (x + m - 1) // m * m


def _round_down_128(x):
    return (x // 128) * 128


def _pow_p(diff, p):
    """|diff| ** p, specialised to avoid abs / EUP pow where possible."""
    if p == 2:
        return diff * diff
    if p == 1:
        return jnp.abs(diff)
    if float(p) == int(p) and int(p) > 0:
        p_int = int(p)
        if p_int % 2 == 0:
            base, reps = diff * diff, p_int // 2
        else:
            base, reps = jnp.abs(diff), p_int
        out = base
        for _ in range(reps - 1):
            out = out * base
        return out
    return jnp.abs(diff) ** p


def _root_p(s, p):
    if p == 2:
        return jnp.sqrt(s)
    if p == 1:
        return s
    return s ** (1.0 / p)


def _pd_kernel_single(x1_ref, x2_ref, o_ref, *, p, eps):
    # Full D in one block: compute, reduce and store directly (no scratch).
    diff = x1_ref[...].astype(jnp.float32) - x2_ref[...].astype(jnp.float32) + eps
    s = jnp.sum(_pow_p(diff, p), axis=-1)                   # (tn,)
    o_ref[...] = _root_p(s, p)[None, :].astype(o_ref.dtype)  # lane-dense (1, tn)


def _pd_kernel_tiled(x1_ref, x2_ref, o_ref, acc_ref, *, p, eps, lanes_per_block):
    k = pl.program_id(1)

    @pl.when(k == 0)
    def _init():
        acc_ref[...] = jnp.zeros_like(acc_ref)

    diff = x1_ref[...].astype(jnp.float32) - x2_ref[...].astype(jnp.float32) + eps
    powed = _pow_p(diff, p)                                  # (tn, td)
    # XLU-free per-step accumulation: fold td lanes down to 128 lane-partials
    # with vreg-aligned 128-wide slices + pure VPU adds.  The single cross-lane
    # reduce + (tn,) -> (1, tn) relayout happen once, in _finalize.
    part = powed[:, 0:128]
    for c in range(1, lanes_per_block):
        part = part + powed[:, c * 128:(c + 1) * 128]
    acc_ref[...] += part

    @pl.when(k == pl.num_programs(1) - 1)
    def _finalize():
        s = jnp.sum(acc_ref[...], axis=-1)                   # (tn,)
        o_ref[...] = _root_p(s, p)[None, :].astype(o_ref.dtype)


def _vmem_budgets():
    """(max_block_bytes, vmem_limit_bytes) tuned per TPU generation."""
    try:
        vmem = int(pltpu.get_tpu_info().vmem_capacity_bytes)
    except Exception:
        vmem = 0
    if vmem and vmem <= 80 * 1024 * 1024:
        # v7x-class: 64 MiB VMEM/TC, ~3.2 TB/s HBM -> bigger blocks pay off.
        return 8 * 1024 * 1024, 48 * 1024 * 1024
    if vmem:
        # v5e / v6e: 128 MiB VMEM; ~4 MiB is already at the roofline knee.
        return 4 * 1024 * 1024, 64 * 1024 * 1024
    # Unknown hardware: conservative defaults that are safe everywhere.
    return 4 * 1024 * 1024, 32 * 1024 * 1024


def _make_in_spec(block_shape, index_map, deep_pipeline):
    if deep_pipeline:
        try:  # Buffered(3) hides DMA issue latency for small per-step blocks.
            return pl.BlockSpec(block_shape, index_map,
                                pipeline_mode=pl.Buffered(3))
        except Exception:
            pass
    return pl.BlockSpec(block_shape, index_map)


def pairwise_distance(x1, x2, p=2, eps=1e-6, *,
                      max_block_bytes=None, vmem_limit_bytes=None):
    assert x1.shape == x2.shape and x1.ndim == 2
    assert x1.dtype == x2.dtype
    N, D = x1.shape
    assert N >= 1 and D >= 1
    itemsize = jnp.dtype(x1.dtype).itemsize
    out_dtype = x1.dtype

    auto_block, auto_limit = _vmem_budgets()
    if max_block_bytes is None:
        max_block_bytes = auto_block
    if vmem_limit_bytes is None:
        vmem_limit_bytes = auto_limit

    # --- D (reduction-axis) tiling: only if a minimum 128-row, full-width block
    #     would blow the budget.  Tiles are multiples of 128; prefer an exact
    #     divisor of D, else pad D up to a multiple of the tile.
    tile_d = 128 * D * itemsize > max_block_bytes
    if tile_d:
        td_max = max(128, _round_down_128(max_block_bytes // (128 * itemsize)))
        td = td_max
        cand = td_max
        while cand >= 128:
            if D % cand == 0:
                td = cand
                break
            cand -= 128
        D_pad = _round_up(D, td)
    else:
        td = D
        D_pad = D

    # --- Row tiling: 128-aligned (lane-dense output), sized by the block
    #     budget, and at least 2 row tiles when N >= 256 so both TensorCores
    #     get work on megacore parts.
    n_pad128 = _round_up(N, 128)
    bytes_per_row = td * itemsize + (128 * 4 if tile_d else 0)  # input + acc
    max_rows = max(128, _round_down_128(max_block_bytes // bytes_per_row))
    tn = min(n_pad128, max_rows)
    if n_pad128 >= 256:
        tn = min(tn, max(128, _round_down_128(n_pad128 // 2)))
    N_pad = _round_up(N, tn)

    # --- Pad inputs so every block is full.  Padded rows are cropped from the
    #     output; padded D columns use an eps-cancelling fill (x1=0, x2=eps so
    #     diff = 0 - eps + eps = 0) and contribute |0|^p == 0 to every row.
    pad_rows, pad_cols = N_pad - N, D_pad - D
    if pad_rows or pad_cols:
        x1 = jnp.pad(x1, ((0, pad_rows), (0, pad_cols)))
        x2 = jnp.pad(x2, ((0, pad_rows), (0, pad_cols)),
                     constant_values=(eps if pad_cols else 0.0))

    if not tile_d:
        grid = (N_pad // tn,)
        in_spec = pl.BlockSpec((tn, D_pad), lambda i: (i, 0))
        out_spec = pl.BlockSpec((1, tn), lambda i: (0, i))
        kernel = functools.partial(_pd_kernel_single, p=p, eps=eps)
        scratch_shapes = []
        dim_sem = ("parallel",)
    else:
        grid = (N_pad // tn, D_pad // td)
        deep = (tn * td * itemsize <= 2 * 1024 * 1024) and grid[1] > 1
        in_spec = _make_in_spec((tn, td), lambda i, k: (i, k), deep)
        out_spec = pl.BlockSpec((1, tn), lambda i, k: (0, i))
        kernel = functools.partial(_pd_kernel_tiled, p=p, eps=eps,
                                   lanes_per_block=td // 128)
        scratch_shapes = [pltpu.VMEM((tn, 128), jnp.float32)]
        dim_sem = ("parallel", "arbitrary")

    out = pl.pallas_call(
        kernel,
        out_shape=jax.ShapeDtypeStruct((1, N_pad), out_dtype),
        grid_spec=pltpu.PrefetchScalarGridSpec(
            num_scalar_prefetch=0,
            grid=grid,
            in_specs=[in_spec, in_spec],
            out_specs=out_spec,
            scratch_shapes=scratch_shapes,
        ),
        compiler_params=pltpu.CompilerParams(
            dimension_semantics=dim_sem,
            vmem_limit_bytes=vmem_limit_bytes,
        ),
    )(x1, x2)
    return out[0, :N].reshape(N, 1)


if __name__ == "__main__":
    key = jax.random.PRNGKey(0)
    k1, k2 = jax.random.split(key)

    def ref_pd(a, b, p=2, eps=1e-6):
        d = a.astype(jnp.float32) - b.astype(jnp.float32) + eps
        return jnp.sum(jnp.abs(d) ** p, axis=1, keepdims=True) ** (1.0 / p)

    # 1) Docstring-style shape with awkward N (row-padding path, single-k).
    N, D = 100, 128
    x1 = jax.random.normal(k1, (N, D), dtype=jnp.float32)
    x2 = jax.random.normal(k2, (N, D), dtype=jnp.float32)
    out = jax.block_until_ready(pairwise_distance(x1, x2))
    assert out.shape == (N, 1)
    assert jnp.allclose(out, ref_pd(x1, x2), atol=1e-5, rtol=1e-5)

    # 2) Default budgets with N >= 256: >=2 row tiles (megacore split).
    a1 = jax.random.normal(k1, (512, 256), dtype=jnp.float32)
    a2 = jax.random.normal(k2, (512, 256), dtype=jnp.float32)
    out2 = jax.block_until_ready(pairwise_distance(a1, a2))
    assert jnp.allclose(out2, ref_pd(a1, a2), atol=1e-4, rtol=1e-4)

    # 3) Forced multi-row-tile path (small block budget), still single-k.
    b1 = jax.random.normal(k1, (512, 128), dtype=jnp.float32)
    b2 = jax.random.normal(k2, (512, 128), dtype=jnp.float32)
    out3 = jax.block_until_ready(
        pairwise_distance(b1, b2, max_block_bytes=64 * 1024))
    assert jnp.allclose(out3, ref_pd(b1, b2), atol=1e-4, rtol=1e-4)

    # 4) D-tiled accumulator path (lane-partial acc, Buffered(3), row padding).
    c1 = jax.random.normal(k1, (64, 512), dtype=jnp.float32)
    c2 = jax.random.normal(k2, (64, 512), dtype=jnp.float32)
    out4 = jax.block_until_ready(
        pairwise_distance(c1, c2, max_block_bytes=8 * 1024))
    assert jnp.allclose(out4, ref_pd(c1, c2), atol=1e-4, rtol=1e-4)

    # 5) D-tiled with D not a multiple of 128 (eps-cancelling column padding).
    d1 = jax.random.normal(k1, (64, 200), dtype=jnp.float32)
    d2 = jax.random.normal(k2, (64, 200), dtype=jnp.float32)
    out5 = jax.block_until_ready(
        pairwise_distance(d1, d2, max_block_bytes=8 * 1024))
    assert jnp.allclose(out5, ref_pd(d1, d2), atol=1e-4, rtol=1e-4)

    # 6) Other norms: p=1 (abs path) and p=3 (odd-integer repeated-multiply path).
    out_p1 = jax.block_until_ready(pairwise_distance(x1, x2, p=1))
    assert jnp.allclose(out_p1, ref_pd(x1, x2, p=1), atol=1e-5, rtol=1e-5)
    out_p3 = jax.block_until_ready(pairwise_distance(x1, x2, p=3))
    assert jnp.allclose(out_p3, ref_pd(x1, x2, p=3), atol=1e-4, rtol=1e-4)

    # 7) bf16 inputs stream narrow from HBM; f32 math in-kernel.
    xb1 = x1.astype(jnp.bfloat16)
    xb2 = x2.astype(jnp.bfloat16)
    out_bf = jax.block_until_ready(pairwise_distance(xb1, xb2))
    assert jnp.allclose(out_bf.astype(jnp.float32), ref_pd(xb1, xb2),
                        atol=5e-2, rtol=5e-2)

    print("KERNEL_OK")
</pallas_src>

<mosaic_0001>
module attributes {stable_mosaic.version = 11 : i64} {
  func.func @_pd_kernel_single(%arg0: i32, %arg1: memref<128x128xf32, #tpu.memory_space<vmem>>, %arg2: memref<128x128xf32, #tpu.memory_space<vmem>>, %arg3: memref<1x128xf32, #tpu.memory_space<vmem>>) attributes {dimension_semantics = [#tpu.dimension_semantics<parallel>], iteration_bounds = array<i64: 1>, scalar_prefetch = 0 : i64, scratch_operands = 0 : i64, tpu.core_type = #tpu.core_type<tc>, window_params = [{transform_indices = @transform_0, window_bounds = array<i64: 128, 128>}, {transform_indices = @transform_1, window_bounds = array<i64: 128, 128>}, {transform_indices = @transform_2, window_bounds = array<i64: 1, 128>}]} {
    %c0 = arith.constant 0 : index
    %c0_0 = arith.constant 0 : index
    %0 = vector.load %arg1[%c0, %c0_0] : memref<128x128xf32, #tpu.memory_space<vmem>>, vector<128x128xf32>
    %c0_1 = arith.constant 0 : index
    %c0_2 = arith.constant 0 : index
    %1 = vector.load %arg2[%c0_1, %c0_2] : memref<128x128xf32, #tpu.memory_space<vmem>>, vector<128x128xf32>
    %2 = arith.subf %0, %1 : vector<128x128xf32>
    %cst = arith.constant 9.99999997E-7 : f32
    %3 = vector.broadcast %cst : f32 to vector<128x128xf32>
    %4 = arith.addf %2, %3 : vector<128x128xf32>
    %5 = arith.mulf %4, %4 : vector<128x128xf32>
    %cst_3 = arith.constant dense<0.000000e+00> : vector<128xf32>
    %6 = vector.multi_reduction <add>, %5, %cst_3 [1] : vector<128x128xf32> to vector<128xf32>
    %7 = math.sqrt %6 : vector<128xf32>
    %8 = vector.shape_cast %7 : vector<128xf32> to vector<1x128xf32>
    %c0_4 = arith.constant 0 : index
    %c0_5 = arith.constant 0 : index
    %9 = vector.load %arg3[%c0_4, %c0_5] : memref<1x128xf32, #tpu.memory_space<vmem>>, vector<1x128xf32>
    tpu.vector_store %arg3[%c0_4, %c0_5], %8 {strides = array<i32>} : memref<1x128xf32, #tpu.memory_space<vmem>>, vector<1x128xf32>,
    return
  }
  func.func @transform_0(%arg0: i32) -> (i32, i32) {
    %c0_i32 = arith.constant 0 : i32
    %c0_i32_0 = arith.constant 0 : i32
    return %arg0, %c0_i32 : i32, i32
  }
  func.func @transform_1(%arg0: i32) -> (i32, i32) {
    %c0_i32 = arith.constant 0 : i32
    %c0_i32_0 = arith.constant 0 : i32
    return %arg0, %c0_i32 : i32, i32
  }
  func.func @transform_2(%arg0: i32) -> (i32, i32) {
    %c0_i32 = arith.constant 0 : i32
    %c0_i32_0 = arith.constant 0 : i32
    return %c0_i32, %arg0 : i32, i32
  }
}

</mosaic_0001>

<llo_original>
// kernel: tpu_custom_call.1
$region0: #{tpu_custom_call.1}
  #allocation0 [shape = 'u32[]', space=smem, size = 0x4, offset = 0x4, fixed_abs, tag = 'smem constant byte address 0x4 - core index']
  #allocation1 [shape = 'u32[144,128]{1,0:T(1,128)}', space=vmem, size = 0x12000, scoped, tag = 'internal scratch']
  %s0 = inlined_call_operand.hbm [shape: f32[128,128], index: 0, kind: input, shape index: {}]
  %s1 = inlined_call_operand.hbm [shape: f32[128,128], index: 1, kind: input, shape index: {}]
  %s2 = inlined_call_operand.hbm [shape: f32[1,128], index: 2, kind: output, shape index: {}]
  %s3 = sld [smem:[#allocation0]]
  $region26: #{tpu_custom_call.1} parent=0
    _
  %s5 = ssub.s32 1, %s3
  %s6 = scalar_select 0, %s5, %s3
  $region1: #{tpu_custom_call.1} parent=0
    #allocation2 [shape = 'u8[65536]{0}', space=vmem, size = 0x10000, scoped, tag = 'input window, operand 0, single buffered']
    #allocation3 [shape = 's32[1]{0}', space=sflag, size = 0x4, scoped, tag = 'scoped memory for tpu_custom_call.1']
    #allocation4 [shape = 's32[1]{0}', space=sflag, size = 0x4, scoped, tag = 'scoped memory for tpu_custom_call.1']
    #allocation5 [shape = 'u8[65536]{0}', space=vmem, size = 0x10000, scoped, tag = 'input window, operand 1, single buffered']
    #allocation6 [shape = 's32[1]{0}', space=sflag, size = 0x4, scoped, tag = 'scoped memory for tpu_custom_call.1']
    #allocation7 [shape = 'u8[512]{0}', space=vmem, size = 0x400, scoped, tag = 'output window, operand 0, single buffered']
    %7 = vsyncpa [#allocation3], 0
    %8 = vsyncpa [#allocation6], 0
    %9 = vsyncpa [#allocation4], 0
    // Predicated region
    $region2: #{tpu_custom_call.1} parent=1 // pred_check
      _
    $region3: #{tpu_custom_call.1} parent=1 // pred_check_branch
      %11 = sbr.rel (0) target = $region5
    $region4: #{tpu_custom_call.1} parent=1 // pred_region
      %s13 = ssub.s32 2048, 2048
      %14 = vsyncadd [#allocation3], %s13
      %s15 = sshll.u32 [#allocation2], 4
      %s16 = int_to_ptr.vmem [resolvable:$true] %s15
      %21 = dma.hbm_to_vmem [thread:$0]  %s0, 2048, %s16, [#allocation3], 128, 128, 8
    $region5: #{tpu_custom_call.1} parent=1 // pred_fallthru
      _
    // Predicated region
    $region6: #{tpu_custom_call.1} parent=1 // pred_check
      _
    $region7: #{tpu_custom_call.1} parent=1 // pred_check_branch
      %23 = sbr.rel (0) target = $region9
    $region8: #{tpu_custom_call.1} parent=1 // pred_region
      %s25 = ssub.s32 2048, 2048
      %26 = vsyncadd [#allocation6], %s25
      %s27 = sshll.u32 [#allocation5], 4
      %s28 = int_to_ptr.vmem [resolvable:$true] %s27
      %33 = dma.hbm_to_vmem [thread:$0]  %s1, 2048, %s28, [#allocation6], 128, 128, 8
    $region9: #{tpu_custom_call.1} parent=1 // pred_fallthru
      _
    // Predicated region
    $region10: #{tpu_custom_call.1} parent=1 // pred_check
      _
    $region11: #{tpu_custom_call.1} parent=1 // pred_check_branch
      %35 = sbr.rel (0) target = $region13
    $region12: #{tpu_custom_call.1} parent=1 // pred_region
      %36 = dma.done [#allocation3], 2048
    $region13: #{tpu_custom_call.1} parent=1 // pred_fallthru
      _
    // Predicated region
    $region14: #{tpu_custom_call.1} parent=1 // pred_check
      _
    $region15: #{tpu_custom_call.1} parent=1 // pred_check_branch
      %38 = sbr.rel (0) target = $region17
    $region16: #{tpu_custom_call.1} parent=1 // pred_region
      %39 = dma.done [#allocation6], 2048
    $region17: #{tpu_custom_call.1} parent=1 // pred_fallthru
      _
    %v40 = vld [vmem:[#allocation2] sm:$0xff]
    %v41 = vld [vmem:[#allocation2 + $0x8] sm:$0xff]
    %v42 = vld [vmem:[#allocation2 + $0x10] sm:$0xff]
    %v43 = vld [vmem:[#allocation2 + $0x18] sm:$0xff]
    %v44 = vld [vmem:[#allocation2 + $0x20] sm:$0xff]
    %v45 = vld [vmem:[#allocation2 + $0x28] sm:$0xff]
    %v46 = vld [vmem:[#allocation2 + $0x30] sm:$0xff]
    %v47 = vld [vmem:[#allocation2 + $0x38] sm:$0xff]
    %v48 = vld [vmem:[#allocation2 + $0x40] sm:$0xff]
    %v49 = vld [vmem:[#allocation2 + $0x48] sm:$0xff]
    %v50 = vld [vmem:[#allocation2 + $0x50] sm:$0xff]
    %v51 = vld [vmem:[#allocation2 + $0x58] sm:$0xff]
    %v52 = vld [vmem:[#allocation2 + $0x60] sm:$0xff]
    %v53 = vld [vmem:[#allocation2 + $0x68] sm:$0xff]
    %v54 = vld [vmem:[#allocation2 + $0x70] sm:$0xff]
    %v55 = vld [vmem:[#allocation2 + $0x78] sm:$0xff]
    %v56 = vld [vmem:[#allocation5] sm:$0xff]
    %v57 = vld [vmem:[#allocation5 + $0x8] sm:$0xff]
    %v58 = vld [vmem:[#allocation5 + $0x10] sm:$0xff]
    %v59 = vld [vmem:[#allocation5 + $0x18] sm:$0xff]
    %v60 = vld [vmem:[#allocation5 + $0x20] sm:$0xff]
    %v61 = vld [vmem:[#allocation5 + $0x28] sm:$0xff]
    %v62 = vld [vmem:[#allocation5 + $0x30] sm:$0xff]
    %v63 = vld [vmem:[#allocation5 + $0x38] sm:$0xff]
    %v64 = vld [vmem:[#allocation5 + $0x40] sm:$0xff]
    %v65 = vld [vmem:[#allocation5 + $0x48] sm:$0xff]
    %v66 = vld [vmem:[#allocation5 + $0x50] sm:$0xff]
    %v67 = vld [vmem:[#allocation5 + $0x58] sm:$0xff]
    %v68 = vld [vmem:[#allocation5 + $0x60] sm:$0xff]
    %v69 = vld [vmem:[#allocation5 + $0x68] sm:$0xff]
    %v70 = vld [vmem:[#allocation5 + $0x70] sm:$0xff]
    %v71 = vld [vmem:[#allocation5 + $0x78] sm:$0xff]
    %v72 = vsub.f32 %v40, %v56
    %v73 = vsub.f32 %v41, %v57
    %v74 = vsub.f32 %v42, %v58
    %v75 = vsub.f32 %v43, %v59
    %v76 = vsub.f32 %v44, %v60
    %v77 = vsub.f32 %v45, %v61
    %v78 = vsub.f32 %v46, %v62
    %v79 = vsub.f32 %v47, %v63
    %v80 = vsub.f32 %v48, %v64
    %v81 = vsub.f32 %v49, %v65
    %v82 = vsub.f32 %v50, %v66
    %v83 = vsub.f32 %v51, %v67
    %v84 = vsub.f32 %v52, %v68
    %v85 = vsub.f32 %v53, %v69
    %v86 = vsub.f32 %v54, %v70
    %v87 = vsub.f32 %v55, %v71
    %v88 = vadd.f32 %v72, 1e-06
    %v89 = vadd.f32 %v73, 1e-06
    %v90 = vadd.f32 %v74, 1e-06
    %v91 = vadd.f32 %v75, 1e-06
    %v92 = vadd.f32 %v76, 1e-06
    %v93 = vadd.f32 %v77, 1e-06
    %v94 = vadd.f32 %v78, 1e-06
    %v95 = vadd.f32 %v79, 1e-06
    %v96 = vadd.f32 %v80, 1e-06
    %v97 = vadd.f32 %v81, 1e-06
    %v98 = vadd.f32 %v82, 1e-06
    %v99 = vadd.f32 %v83, 1e-06
    %v100 = vadd.f32 %v84, 1e-06
    %v101 = vadd.f32 %v85, 1e-06
    %v102 = vadd.f32 %v86, 1e-06
    %v103 = vadd.f32 %v87, 1e-06
    %v104 = vmul.f32 %v88, %v88
    %v105 = vmul.f32 %v89, %v89
    %v106 = vmul.f32 %v90, %v90
    %v107 = vmul.f32 %v91, %v91
    %v108 = vmul.f32 %v92, %v92
    %v109 = vmul.f32 %v93, %v93
    %v110 = vmul.f32 %v94, %v94
    %v111 = vmul.f32 %v95, %v95
    %v112 = vmul.f32 %v96, %v96
    %v113 = vmul.f32 %v97, %v97
    %v114 = vmul.f32 %v98, %v98
    %v115 = vmul.f32 %v99, %v99
    %v116 = vmul.f32 %v100, %v100
    %v117 = vmul.f32 %v101, %v101
    %v118 = vmul.f32 %v102, %v102
    %v119 = vmul.f32 %v103, %v103
    %120 = vadd.xlane.f32.xlu0 %v104
    %v121 = vpop.xlane.xlu0 %120
    %122 = vadd.xlane.f32.xlu0 %v105
    %v123 = vpop.xlane.xlu0 %122
    %124 = vadd.xlane.f32.xlu0 %v106
    %v125 = vpop.xlane.xlu0 %124
    %126 = vadd.xlane.f32.xlu0 %v107
    %v127 = vpop.xlane.xlu0 %126
    %128 = vadd.xlane.f32.xlu0 %v108
    %v129 = vpop.xlane.xlu0 %128
    %130 = vadd.xlane.f32.xlu0 %v109
    %v131 = vpop.xlane.xlu0 %130
    %132 = vadd.xlane.f32.xlu0 %v110
    %v133 = vpop.xlane.xlu0 %132
    %134 = vadd.xlane.f32.xlu0 %v111
    %v135 = vpop.xlane.xlu0 %134
    %136 = vadd.xlane.f32.xlu0 %v112
    %v137 = vpop.xlane.xlu0 %136
    %138 = vadd.xlane.f32.xlu0 %v113
    %v139 = vpop.xlane.xlu0 %138
    %140 = vadd.xlane.f32.xlu0 %v114
    %v141 = vpop.xlane.xlu0 %140
    %142 = vadd.xlane.f32.xlu0 %v115
    %v143 = vpop.xlane.xlu0 %142
    %144 = vadd.xlane.f32.xlu0 %v116
    %v145 = vpop.xlane.xlu0 %144
    %146 = vadd.xlane.f32.xlu0 %v117
    %v147 = vpop.xlane.xlu0 %146
    %148 = vadd.xlane.f32.xlu0 %v118
    %v149 = vpop.xlane.xlu0 %148
    %150 = vadd.xlane.f32.xlu0 %v119
    %v151 = vpop.xlane.xlu0 %150
    %v152 = vrsqrt.pop %v121
    %v153 = vmul.f32 %v121, %v152
    %vm154 = vcmp.eq.f32.partialorder %v121, inf
    %v155 = vsel %vm154, %v121, %v153
    %vm156 = vcmp.eq.f32.partialorder %v121, 0.0
    %v157 = vand.u32 %v121, 2147483648
    %v158 = vsel %vm156, %v157, %v155
    %v159 = vrsqrt.pop %v123
    %v160 = vmul.f32 %v123, %v159
    %vm161 = vcmp.eq.f32.partialorder %v123, inf
    %v162 = vsel %vm161, %v123, %v160
    %vm163 = vcmp.eq.f32.partialorder %v123, 0.0
    %v164 = vand.u32 %v123, 2147483648
    %v165 = vsel %vm163, %v164, %v162
    %v166 = vrsqrt.pop %v125
    %v167 = vmul.f32 %v125, %v166
    %vm168 = vcmp.eq.f32.partialorder %v125, inf
    %v169 = vsel %vm168, %v125, %v167
    %vm170 = vcmp.eq.f32.partialorder %v125, 0.0
    %v171 = vand.u32 %v125, 2147483648
    %v172 = vsel %vm170, %v171, %v169
    %v173 = vrsqrt.pop %v127
    %v174 = vmul.f32 %v127, %v173
    %vm175 = vcmp.eq.f32.partialorder %v127, inf
    %v176 = vsel %vm175, %v127, %v174
    %vm177 = vcmp.eq.f32.partialorder %v127, 0.0
    %v178 = vand.u32 %v127, 2147483648
    %v179 = vsel %vm177, %v178, %v176
    %v180 = vrsqrt.pop %v129
    %v181 = vmul.f32 %v129, %v180
    %vm182 = vcmp.eq.f32.partialorder %v129, inf
    %v183 = vsel %vm182, %v129, %v181
    %vm184 = vcmp.eq.f32.partialorder %v129, 0.0
    %v185 = vand.u32 %v129, 2147483648
    %v186 = vsel %vm184, %v185, %v183
    %v187 = vrsqrt.pop %v131
    %v188 = vmul.f32 %v131, %v187
    %vm189 = vcmp.eq.f32.partialorder %v131, inf
    %v190 = vsel %vm189, %v131, %v188
    %vm191 = vcmp.eq.f32.partialorder %v131, 0.0
    %v192 = vand.u32 %v131, 2147483648
    %v193 = vsel %vm191, %v192, %v190
    %v194 = vrsqrt.pop %v133
    %v195 = vmul.f32 %v133, %v194
    %vm196 = vcmp.eq.f32.partialorder %v133, inf
    %v197 = vsel %vm196, %v133, %v195
    %vm198 = vcmp.eq.f32.partialorder %v133, 0.0
    %v199 = vand.u32 %v133, 2147483648
    %v200 = vsel %vm198, %v199, %v197
    %v201 = vrsqrt.pop %v135
    %v202 = vmul.f32 %v135, %v201
    %vm203 = vcmp.eq.f32.partialorder %v135, inf
    %v204 = vsel %vm203, %v135, %v202
    %vm205 = vcmp.eq.f32.partialorder %v135, 0.0
    %v206 = vand.u32 %v135, 2147483648
    %v207 = vsel %vm205, %v206, %v204
    %v208 = vrsqrt.pop %v137
    %v209 = vmul.f32 %v137, %v208
    %vm210 = vcmp.eq.f32.partialorder %v137, inf
    %v211 = vsel %vm210, %v137, %v209
    %vm212 = vcmp.eq.f32.partialorder %v137, 0.0
    %v213 = vand.u32 %v137, 2147483648
    %v214 = vsel %vm212, %v213, %v211
    %v215 = vrsqrt.pop %v139
    %v216 = vmul.f32 %v139, %v215
    %vm217 = vcmp.eq.f32.partialorder %v139, inf
    %v218 = vsel %vm217, %v139, %v216
    %vm219 = vcmp.eq.f32.partialorder %v139, 0.0
    %v220 = vand.u32 %v139, 2147483648
    %v221 = vsel %vm219, %v220, %v218
    %v222 = vrsqrt.pop %v141
    %v223 = vmul.f32 %v141, %v222
    %vm224 = vcmp.eq.f32.partialorder %v141, inf
    %v225 = vsel %vm224, %v141, %v223
    %vm226 = vcmp.eq.f32.partialorder %v141, 0.0
    %v227 = vand.u32 %v141, 2147483648
    %v228 = vsel %vm226, %v227, %v225
    %v229 = vrsqrt.pop %v143
    %v230 = vmul.f32 %v143, %v229
    %vm231 = vcmp.eq.f32.partialorder %v143, inf
    %v232 = vsel %vm231, %v143, %v230
    %vm233 = vcmp.eq.f32.partialorder %v143, 0.0
    %v234 = vand.u32 %v143, 2147483648
    %v235 = vsel %vm233, %v234, %v232
    %v236 = vrsqrt.pop %v145
    %v237 = vmul.f32 %v145, %v236
    %vm238 = vcmp.eq.f32.partialorder %v145, inf
    %v239 = vsel %vm238, %v145, %v237
    %vm240 = vcmp.eq.f32.partialorder %v145, 0.0
    %v241 = vand.u32 %v145, 2147483648
    %v242 = vsel %vm240, %v241, %v239
    %v243 = vrsqrt.pop %v147
    %v244 = vmul.f32 %v147, %v243
    %vm245 = vcmp.eq.f32.partialorder %v147, inf
    %v246 = vsel %vm245, %v147, %v244
    %vm247 = vcmp.eq.f32.partialorder %v147, 0.0
    %v248 = vand.u32 %v147, 2147483648
    %v249 = vsel %vm247, %v248, %v246
    %v250 = vrsqrt.pop %v149
    %v251 = vmul.f32 %v149, %v250
    %vm252 = vcmp.eq.f32.partialorder %v149, inf
    %v253 = vsel %vm252, %v149, %v251
    %vm254 = vcmp.eq.f32.partialorder %v149, 0.0
    %v255 = vand.u32 %v149, 2147483648
    %v256 = vsel %vm254, %v255, %v253
    %v257 = vrsqrt.pop %v151
    %v258 = vmul.f32 %v151, %v257
    %vm259 = vcmp.eq.f32.partialorder %v151, inf
    %v260 = vsel %vm259, %v151, %v258
    %vm261 = vcmp.eq.f32.partialorder %v151, 0.0
    %v262 = vand.u32 %v151, 2147483648
    %v263 = vsel %vm261, %v262, %v260
    %v280 = vlaneseq
    %v281 = vand.u32 %v280, 127
    %v282 = vlaneseq
    %v283 = vshrl.u32 %v282, 7
    %v284 = vsub.s32 %v281, %v283
    %v285 = vrot.slane %v158, %v284
    %v286 = vadd.s32 %v281, 4294967288
    %v287 = vlaneseq
    %v288 = vshrl.u32 %v287, 7
    %v289 = vsub.s32 %v286, %v288
    %v290 = vrot.slane %v165, %v289
    %vm291 = vcmask 130112
    %v292 = vsel %vm291, %v290, %v285
    %v293 = vadd.s32 %v281, 4294967280
    %v294 = vlaneseq
    %v295 = vshrl.u32 %v294, 7
    %v296 = vsub.s32 %v293, %v295
    %v297 = vrot.slane %v172, %v296
    %vm298 = vcmask 195712
    %v299 = vsel %vm298, %v297, %v292
    %v300 = vadd.s32 %v281, 4294967272
    %v301 = vlaneseq
    %v302 = vshrl.u32 %v301, 7
    %v303 = vsub.s32 %v300, %v302
    %v304 = vrot.slane %v179, %v303
    %vm305 = vcmask 261312
    %v306 = vsel %vm305, %v304, %v299
    %v307 = vadd.s32 %v281, 4294967264
    %v308 = vlaneseq
    %v309 = vshrl.u32 %v308, 7
    %v310 = vsub.s32 %v307, %v309
    %v311 = vrot.slane %v186, %v310
    %vm312 = vcmask 326912
    %v313 = vsel %vm312, %v311, %v306
    %v314 = vadd.s32 %v281, 4294967256
    %v315 = vlaneseq
    %v316 = vshrl.u32 %v315, 7
    %v317 = vsub.s32 %v314, %v316
    %v318 = vrot.slane %v193, %v317
    %vm319 = vcmask 392512
    %v320 = vsel %vm319, %v318, %v313
    %v321 = vadd.s32 %v281, 4294967248
    %v322 = vlaneseq
    %v323 = vshrl.u32 %v322, 7
    %v324 = vsub.s32 %v321, %v323
    %v325 = vrot.slane %v200, %v324
    %vm326 = vcmask 458112
    %v327 = vsel %vm326, %v325, %v320
    %v328 = vadd.s32 %v281, 4294967240
    %v329 = vlaneseq
    %v330 = vshrl.u32 %v329, 7
    %v331 = vsub.s32 %v328, %v330
    %v332 = vrot.slane %v207, %v331
    %vm333 = vcmask 523712
    %v334 = vsel %vm333, %v332, %v327
    %v335 = vadd.s32 %v281, 4294967232
    %v336 = vlaneseq
    %v337 = vshrl.u32 %v336, 7
    %v338 = vsub.s32 %v335, %v337
    %v339 = vrot.slane %v214, %v338
    %vm340 = vcmask 589312
    %v341 = vsel %vm340, %v339, %v334
    %v342 = vadd.s32 %v281, 4294967224
    %v343 = vlaneseq
    %v344 = vshrl.u32 %v343, 7
    %v345 = vsub.s32 %v342, %v344
    %v346 = vrot.slane %v221, %v345
    %vm347 = vcmask 654912
    %v348 = vsel %vm347, %v346, %v341
    %v349 = vadd.s32 %v281, 4294967216
    %v350 = vlaneseq
    %v351 = vshrl.u32 %v350, 7
    %v352 = vsub.s32 %v349, %v351
    %v353 = vrot.slane %v228, %v352
    %vm354 = vcmask 720512
    %v355 = vsel %vm354, %v353, %v348
    %v356 = vadd.s32 %v281, 4294967208
    %v357 = vlaneseq
    %v358 = vshrl.u32 %v357, 7
    %v359 = vsub.s32 %v356, %v358
    %v360 = vrot.slane %v235, %v359
    %vm361 = vcmask 786112
    %v362 = vsel %vm361, %v360, %v355
    %v363 = vadd.s32 %v281, 4294967200
    %v364 = vlaneseq
    %v365 = vshrl.u32 %v364, 7
    %v366 = vsub.s32 %v363, %v365
    %v367 = vrot.slane %v242, %v366
    %vm368 = vcmask 851712
    %v369 = vsel %vm368, %v367, %v362
    %v370 = vadd.s32 %v281, 4294967192
    %v371 = vlaneseq
    %v372 = vshrl.u32 %v371, 7
    %v373 = vsub.s32 %v370, %v372
    %v374 = vrot.slane %v249, %v373
    %vm375 = vcmask 917312
    %v376 = vsel %vm375, %v374, %v369
    %v377 = vadd.s32 %v281, 4294967184
    %v378 = vlaneseq
    %v379 = vshrl.u32 %v378, 7
    %v380 = vsub.s32 %v377, %v379
    %v381 = vrot.slane %v256, %v380
    %vm382 = vcmask 982912
    %v383 = vsel %vm382, %v381, %v376
    %v384 = vadd.s32 %v281, 4294967176
    %v385 = vlaneseq
    %v386 = vshrl.u32 %v385, 7
    %v387 = vsub.s32 %v384, %v386
    %v388 = vrot.slane %v263, %v387
    %vm389 = vcmask 1048512
    %v390 = vsel %vm389, %v388, %v383
    %392 = vst [vmem:[#allocation7] sm:$0x1] %v390
    // Predicated region
    $region18: #{tpu_custom_call.1} parent=1 // pred_check
      _
    $region19: #{tpu_custom_call.1} parent=1 // pred_check_branch
      %394 = sbr.rel (0) target = $region21
    $region20: #{tpu_custom_call.1} parent=1 // pred_region
      %s396 = ssub.s32 16, 16
      %397 = vsyncadd [#allocation4], %s396
      %s399 = sshll.u32 [#allocation7], 4
      %s400 = int_to_ptr.vmem [resolvable:$true] %s399
      %402 = dma.vmem_to_hbm [thread:$0]  %s400, 16, %s2, [#allocation4]
    $region21: #{tpu_custom_call.1} parent=1 // pred_fallthru
      _
    // Predicated region
    $region22: #{tpu_custom_call.1} parent=1 // pred_check
      _
    $region23: #{tpu_custom_call.1} parent=1 // pred_check_branch
      %404 = sbr.rel (0) target = $region25
    $region24: #{tpu_custom_call.1} parent=1 // pred_region
      %405 = dma.done [#allocation4], 16
    $region25: #{tpu_custom_call.1} parent=1 // pred_fallthru
      _
    %406 = vsyncpa [#allocation3], 1
    %407 = vsyncpa [#allocation6], 1
    %408 = vsyncpa [#allocation4], 1

</llo_original>
